<compile_context>
chip_gen: v7x
topology: tpu7x:2x2x1
jax: 0.10.0
libtpu: 0.0.40
codegen_flags: <defaults>
</compile_context>

<pallas_src>
import functools

import jax
import jax.numpy as jnp
from jax.experimental import pallas as pl
from jax.experimental.pallas import tpu as pltpu

TOPK = 3


def _refined_recip(x):
    """EUP approximate reciprocal + one Newton-Raphson step (2 cheap VPU ops)."""
    r = pl.reciprocal(x, approx=True)
    return r * (2.0 - x * r)


def moe_selector_kernel(logits_ref, out_ref, *, topk):
    # Block: (n_splits, n_skills, TL) f32 — tasks on the lane axis.
    n_splits, n_skills, tl = logits_ref.shape

    # Reference quirk: `top_probs[:, :topk]` slices the SPLITS axis, so only the
    # first min(n_splits, topk) splits ever receive nonzero weights and the
    # per-slot normalization sums over exactly those splits.  Splits >= m_slice
    # are pure zeros, so don't compute them at all (leading-axis slice is free).
    m_slice = min(n_splits, topk)
    k_steps = min(topk, n_skills)            # guard topk > n_skills

    logits = logits_ref[:m_slice]            # (m, n_skills, TL)

    # Softmax pieces over the skill (sublane) axis.  Full `probs` is never
    # formed: top-k ordering on e is the same as on probs.
    mx = jnp.max(logits, axis=1, keepdims=True)
    e = jnp.exp(logits - mx)                                        # (m, n_skills, TL), > 0
    inv_sum_e = _refined_recip(jnp.sum(e, axis=1, keepdims=True))   # (m, 1, TL)

    # Pack (value, skill-id) into one int32 key so each top-k step needs a
    # single sublane reduce + a single broadcast compare.
    n_bits = max(1, (n_skills - 1).bit_length())
    hi_mask = ~((1 << n_bits) - 1)
    skill_iota = jax.lax.broadcasted_iota(jnp.int32, (1, n_skills, tl), 1)
    key = (pltpu.bitcast(e, jnp.int32) & hi_mask) | (n_skills - 1 - skill_iota)

    acc = None
    for step in range(k_steps):
        key_max = jnp.max(key, axis=1, keepdims=True)           # (m, 1, TL)   XLU reduce
        oh = key == key_max                                     # (m, n_skills, TL) unique one-hot
        v_e = pltpu.bitcast(key_max & hi_mask, jnp.float32)     # k-th largest e (low bits cleared)
        v_p = v_e * inv_sum_e                                   # k-th largest prob, (m, 1, TL)
        denom = jnp.sum(v_p, axis=0, keepdims=True)             # (1, 1, TL) — sliced splits only
        normed = v_p * _refined_recip(denom)                    # (m, 1, TL)
        # One-hots are disjoint across steps -> select straight into the accumulator.
        acc = jnp.where(oh, normed, 0.0 if acc is None else acc)
        if step + 1 < k_steps:
            key = jnp.where(oh, -1, key)                        # keys >= 0, so -1 masks out

    if m_slice == n_splits:
        out_ref[...] = acc
    else:
        out_ref[:m_slice] = acc
        out_ref[m_slice:] = jnp.zeros((n_splits - m_slice, n_skills, tl), jnp.float32)


def _round_up(x, m):
    return ((x + m - 1) // m) * m


def moe_selector_forward(module_logits, task_ids, n_splits, n_skills,
                         topk=TOPK, block_t=1024):
    """Eval-mode MoESelector.forward.

    Outputs depend only on the task id, so the selector weights are computed
    once per task (kernel work O(n_tasks), not O(B)) and expanded to the batch
    with a single gather.  Only tiny O(n_tasks) transposes remain in the
    wrapper; no O(B) layout passes.
    """
    # TODO(synk): training-mode Gaussian noise (randn_like / n_skills) is
    #             per-sample; that path would need per-sample kernel work
    #             (pltpu.prng_seed + pltpu.stateful_normal) instead of the
    #             per-task dedup used here (eval parity only).
    n_tasks = module_logits.shape[0]

    # Tiny per-task table transposed ONCE so tasks ride the lane axis.
    mlt = jnp.transpose(
        module_logits.astype(jnp.float32).reshape(n_tasks, n_splits, n_skills),
        (1, 2, 0))                                            # (n_splits, n_skills, n_tasks)

    # Lane-pad the task axis to a multiple of the (128-aligned) block size.
    tb = min(_round_up(block_t, 128), _round_up(n_tasks, 128))
    tt = _round_up(n_tasks, tb)
    if tt != n_tasks:
        mlt = jnp.pad(mlt, ((0, 0), (0, 0), (0, tt - n_tasks)))

    kernel = functools.partial(moe_selector_kernel, topk=topk)
    per_task_t = pl.pallas_call(
        kernel,
        out_shape=jax.ShapeDtypeStruct((n_splits, n_skills, tt), jnp.float32),
        grid=(tt // tb,),
        in_specs=[pl.BlockSpec((n_splits, n_skills, tb), lambda i: (0, 0, i))],
        out_specs=pl.BlockSpec((n_splits, n_skills, tb), lambda i: (0, 0, i)),
        compiler_params=pltpu.CompilerParams(dimension_semantics=("parallel",)),
    )(mlt)

    # Tiny O(n_tasks) transpose back, then ONE O(B) gather to the batch layout.
    per_task = jnp.transpose(per_task_t[:, :, :n_tasks], (2, 0, 1))  # (n_tasks, ns, nk)
    return per_task[task_ids]                                        # (B, ns, nk)


def moe_selector_ref(module_logits, task_ids, n_splits, n_skills, topk=TOPK):
    """Pure-JAX reference mirroring the PyTorch code line by line (eval mode)."""
    ml = module_logits[task_ids].reshape(-1, n_splits, n_skills)
    probs = jax.nn.softmax(ml, axis=-1)
    top_probs, top_indices = jax.lax.top_k(probs, topk)
    top_k_probs = top_probs[:, :topk]
    top_k_indices = top_indices[:, :topk]
    top_k_probs = top_k_probs / jnp.sum(top_k_probs, axis=1, keepdims=True)
    zeros = jnp.zeros_like(probs)
    b = ml.shape[0]
    m = top_k_indices.shape[1]
    b_idx = jnp.arange(b)[:, None, None]
    s_idx = jnp.arange(m)[None, :, None]
    return zeros.at[b_idx, s_idx, top_k_indices].set(top_k_probs)


if __name__ == "__main__":
    TOL = 1e-4   # NR-refined reciprocals + 3-bit mantissa truncation => ~1e-6 error

    key = jax.random.PRNGKey(0)
    k_logits, k_tasks_a, k_tasks_b, k_logits2, k_tasks_c = jax.random.split(key, 5)

    # Config 1: n_splits=4 > topk=3 exercises the sliced-splits (partial store) path.
    n_tasks, n_splits, n_skills = 8, 4, 8
    module_logits = jax.random.uniform(
        k_logits, (n_tasks, n_splits * n_skills),
        minval=-0.001, maxval=0.001, dtype=jnp.float32)

    batch = 6
    task_ids = jax.random.randint(k_tasks_a, (batch,), 0, n_tasks)
    out = jax.block_until_ready(
        moe_selector_forward(module_logits, task_ids, n_splits, n_skills))
    ref = moe_selector_ref(module_logits, task_ids, n_splits, n_skills)
    assert out.shape == (batch, n_splits, n_skills)
    assert jnp.allclose(out, ref, atol=TOL), "Pallas kernel mismatch (small batch)"

    # Larger batch: per-task dedup means the kernel does the same tiny work;
    # only the final gather scales with B.
    batch2 = 700
    task_ids2 = jax.random.randint(k_tasks_b, (batch2,), 0, n_tasks)
    out2 = jax.block_until_ready(
        moe_selector_forward(module_logits, task_ids2, n_splits, n_skills))
    ref2 = moe_selector_ref(module_logits, task_ids2, n_splits, n_skills)
    assert out2.shape == (batch2, n_splits, n_skills)
    assert jnp.allclose(out2, ref2, atol=TOL), "Pallas kernel mismatch (large batch)"

    # Config 2: n_splits=2 <= topk exercises the full-store path and a
    # non-multiple-of-8 task count / non-power-of-2-adjacent skill count.
    n_tasks3, n_splits3, n_skills3 = 5, 2, 16
    module_logits3 = jax.random.uniform(
        k_logits2, (n_tasks3, n_splits3 * n_skills3),
        minval=-0.001, maxval=0.001, dtype=jnp.float32)
    batch3 = 9
    task_ids3 = jax.random.randint(k_tasks_c, (batch3,), 0, n_tasks3)
    out3 = jax.block_until_ready(
        moe_selector_forward(module_logits3, task_ids3, n_splits3, n_skills3))
    ref3 = moe_selector_ref(module_logits3, task_ids3, n_splits3, n_skills3)
    assert out3.shape == (batch3, n_splits3, n_skills3)
    assert jnp.allclose(out3, ref3, atol=TOL), "Pallas kernel mismatch (config 2)"

    print("KERNEL_OK")
</pallas_src>

<mosaic_0001>
module attributes {stable_mosaic.version = 11 : i64} {
  func.func @moe_selector_kernel(%arg0: i32, %arg1: memref<4x8x128xf32, #tpu.memory_space<vmem>>, %arg2: memref<4x8x128xf32, #tpu.memory_space<vmem>>) attributes {dimension_semantics = [#tpu.dimension_semantics<parallel>], iteration_bounds = array<i64: 1>, scalar_prefetch = 0 : i64, scratch_operands = 0 : i64, tpu.core_type = #tpu.core_type<tc>, window_params = [{transform_indices = @transform_0, window_bounds = array<i64: 4, 8, 128>}, {transform_indices = @transform_1, window_bounds = array<i64: 4, 8, 128>}]} {
    %c0 = arith.constant 0 : index
    %c0_0 = arith.constant 0 : index
    %c0_1 = arith.constant 0 : index
    %0 = vector.load %arg1[%c0, %c0_0, %c0_1] : memref<4x8x128xf32, #tpu.memory_space<vmem>>, vector<3x8x128xf32>
    %cst = arith.constant dense<0xFF800000> : vector<3x128xf32>
    %1 = vector.multi_reduction <maximumf>, %0, %cst [1] : vector<3x8x128xf32> to vector<3x128xf32>
    %2 = vector.shape_cast %1 : vector<3x128xf32> to vector<3x1x128xf32>
    %3 = vector.broadcast %2 : vector<3x1x128xf32> to vector<3x8x128xf32>
    %4 = arith.subf %0, %3 : vector<3x8x128xf32>
    %5 = math.exp %4 : vector<3x8x128xf32>
    %cst_2 = arith.constant dense<0.000000e+00> : vector<3x128xf32>
    %6 = vector.multi_reduction <add>, %5, %cst_2 [1] : vector<3x8x128xf32> to vector<3x128xf32>
    %7 = vector.shape_cast %6 : vector<3x128xf32> to vector<3x1x128xf32>
    %8 = tpu.reciprocal %7 {approx = true} : vector<3x1x128xf32> -> vector<3x1x128xf32>
    %9 = arith.mulf %7, %8 : vector<3x1x128xf32>
    %cst_3 = arith.constant 2.000000e+00 : f32
    %10 = vector.broadcast %cst_3 : f32 to vector<3x1x128xf32>
    %11 = arith.subf %10, %9 : vector<3x1x128xf32>
    %12 = arith.mulf %8, %11 : vector<3x1x128xf32>
    %13 = tpu.iota {dimensions = array<i32: 1>} : vector<1x8x128xi32>
    %14 = tpu.bitcast %5 : vector<3x8x128xf32> -> vector<3x8x128xi32>
    %c-8_i32 = arith.constant -8 : i32
    %15 = vector.broadcast %c-8_i32 : i32 to vector<3x8x128xi32>
    %16 = arith.andi %14, %15 : vector<3x8x128xi32>
    %c7_i32 = arith.constant 7 : i32
    %17 = vector.broadcast %c7_i32 : i32 to vector<1x8x128xi32>
    %18 = arith.subi %17, %13 : vector<1x8x128xi32>
    %19 = vector.broadcast %18 : vector<1x8x128xi32> to vector<3x8x128xi32>
    %20 = arith.ori %16, %19 : vector<3x8x128xi32>
    %cst_4 = arith.constant dense<-2147483648> : vector<3x128xi32>
    %21 = vector.multi_reduction <maxsi>, %20, %cst_4 [1] : vector<3x8x128xi32> to vector<3x128xi32>
    %22 = vector.shape_cast %21 : vector<3x128xi32> to vector<3x1x128xi32>
    %23 = vector.broadcast %22 : vector<3x1x128xi32> to vector<3x8x128xi32>
    %24 = arith.cmpi eq, %20, %23 : vector<3x8x128xi32>
    %c-8_i32_5 = arith.constant -8 : i32
    %25 = vector.broadcast %c-8_i32_5 : i32 to vector<3x1x128xi32>
    %26 = arith.andi %22, %25 : vector<3x1x128xi32>
    %27 = tpu.bitcast %26 : vector<3x1x128xi32> -> vector<3x1x128xf32>
    %28 = arith.mulf %27, %12 : vector<3x1x128xf32>
    %cst_6 = arith.constant dense<0.000000e+00> : vector<1x128xf32>
    %29 = vector.multi_reduction <add>, %28, %cst_6 [0] : vector<3x1x128xf32> to vector<1x128xf32>
    %30 = vector.shape_cast %29 : vector<1x128xf32> to vector<1x1x128xf32>
    %31 = tpu.reciprocal %30 {approx = true} : vector<1x1x128xf32> -> vector<1x1x128xf32>
    %32 = arith.mulf %30, %31 : vector<1x1x128xf32>
    %cst_7 = arith.constant 2.000000e+00 : f32
    %33 = vector.broadcast %cst_7 : f32 to vector<1x1x128xf32>
    %34 = arith.subf %33, %32 : vector<1x1x128xf32>
    %35 = arith.mulf %31, %34 : vector<1x1x128xf32>
    %36 = vector.broadcast %35 : vector<1x1x128xf32> to vector<3x1x128xf32>
    %37 = arith.mulf %28, %36 : vector<3x1x128xf32>
    %cst_8 = arith.constant 0.000000e+00 : f32
    %38 = vector.shape_cast %37 : vector<3x1x128xf32> to vector<3x1x128xf32>
    %39 = vector.broadcast %38 : vector<3x1x128xf32> to vector<3x8x128xf32>
    %40 = vector.broadcast %cst_8 : f32 to vector<3x8x128xf32>
    %41 = arith.select %24, %39, %40 : vector<3x8x128xi1>, vector<3x8x128xf32>
    %c-1_i32 = arith.constant -1 : i32
    %42 = vector.broadcast %c-1_i32 : i32 to vector<3x8x128xi32>
    %43 = arith.select %24, %42, %20 : vector<3x8x128xi1>, vector<3x8x128xi32>
    %cst_9 = arith.constant dense<-2147483648> : vector<3x128xi32>
    %44 = vector.multi_reduction <maxsi>, %43, %cst_9 [1] : vector<3x8x128xi32> to vector<3x128xi32>
    %45 = vector.shape_cast %44 : vector<3x128xi32> to vector<3x1x128xi32>
    %46 = vector.broadcast %45 : vector<3x1x128xi32> to vector<3x8x128xi32>
    %47 = arith.cmpi eq, %43, %46 : vector<3x8x128xi32>
    %c-8_i32_10 = arith.constant -8 : i32
    %48 = vector.broadcast %c-8_i32_10 : i32 to vector<3x1x128xi32>
    %49 = arith.andi %45, %48 : vector<3x1x128xi32>
    %50 = tpu.bitcast %49 : vector<3x1x128xi32> -> vector<3x1x128xf32>
    %51 = arith.mulf %50, %12 : vector<3x1x128xf32>
    %cst_11 = arith.constant dense<0.000000e+00> : vector<1x128xf32>
    %52 = vector.multi_reduction <add>, %51, %cst_11 [0] : vector<3x1x128xf32> to vector<1x128xf32>
    %53 = vector.shape_cast %52 : vector<1x128xf32> to vector<1x1x128xf32>
    %54 = tpu.reciprocal %53 {approx = true} : vector<1x1x128xf32> -> vector<1x1x128xf32>
    %55 = arith.mulf %53, %54 : vector<1x1x128xf32>
    %cst_12 = arith.constant 2.000000e+00 : f32
    %56 = vector.broadcast %cst_12 : f32 to vector<1x1x128xf32>
    %57 = arith.subf %56, %55 : vector<1x1x128xf32>
    %58 = arith.mulf %54, %57 : vector<1x1x128xf32>
    %59 = vector.broadcast %58 : vector<1x1x128xf32> to vector<3x1x128xf32>
    %60 = arith.mulf %51, %59 : vector<3x1x128xf32>
    %61 = vector.shape_cast %60 : vector<3x1x128xf32> to vector<3x1x128xf32>
    %62 = vector.broadcast %61 : vector<3x1x128xf32> to vector<3x8x128xf32>
    %63 = arith.select %47, %62, %41 : vector<3x8x128xi1>, vector<3x8x128xf32>
    %c-1_i32_13 = arith.constant -1 : i32
    %64 = vector.broadcast %c-1_i32_13 : i32 to vector<3x8x128xi32>
    %65 = arith.select %47, %64, %43 : vector<3x8x128xi1>, vector<3x8x128xi32>
    %cst_14 = arith.constant dense<-2147483648> : vector<3x128xi32>
    %66 = vector.multi_reduction <maxsi>, %65, %cst_14 [1] : vector<3x8x128xi32> to vector<3x128xi32>
    %67 = vector.shape_cast %66 : vector<3x128xi32> to vector<3x1x128xi32>
    %68 = vector.broadcast %67 : vector<3x1x128xi32> to vector<3x8x128xi32>
    %69 = arith.cmpi eq, %65, %68 : vector<3x8x128xi32>
    %c-8_i32_15 = arith.constant -8 : i32
    %70 = vector.broadcast %c-8_i32_15 : i32 to vector<3x1x128xi32>
    %71 = arith.andi %67, %70 : vector<3x1x128xi32>
    %72 = tpu.bitcast %71 : vector<3x1x128xi32> -> vector<3x1x128xf32>
    %73 = arith.mulf %72, %12 : vector<3x1x128xf32>
    %cst_16 = arith.constant dense<0.000000e+00> : vector<1x128xf32>
    %74 = vector.multi_reduction <add>, %73, %cst_16 [0] : vector<3x1x128xf32> to vector<1x128xf32>
    %75 = vector.shape_cast %74 : vector<1x128xf32> to vector<1x1x128xf32>
    %76 = tpu.reciprocal %75 {approx = true} : vector<1x1x128xf32> -> vector<1x1x128xf32>
    %77 = arith.mulf %75, %76 : vector<1x1x128xf32>
    %cst_17 = arith.constant 2.000000e+00 : f32
    %78 = vector.broadcast %cst_17 : f32 to vector<1x1x128xf32>
    %79 = arith.subf %78, %77 : vector<1x1x128xf32>
    %80 = arith.mulf %76, %79 : vector<1x1x128xf32>
    %81 = vector.broadcast %80 : vector<1x1x128xf32> to vector<3x1x128xf32>
    %82 = arith.mulf %73, %81 : vector<3x1x128xf32>
    %83 = vector.shape_cast %82 : vector<3x1x128xf32> to vector<3x1x128xf32>
    %84 = vector.broadcast %83 : vector<3x1x128xf32> to vector<3x8x128xf32>
    %85 = arith.select %69, %84, %63 : vector<3x8x128xi1>, vector<3x8x128xf32>
    %c0_18 = arith.constant 0 : index
    %c0_19 = arith.constant 0 : index
    %c0_20 = arith.constant 0 : index
    %86 = vector.load %arg2[%c0_18, %c0_19, %c0_20] : memref<4x8x128xf32, #tpu.memory_space<vmem>>, vector<3x8x128xf32>
    tpu.vector_store %arg2[%c0_18, %c0_19, %c0_20], %85 {strides = array<i32>} : memref<4x8x128xf32, #tpu.memory_space<vmem>>, vector<3x8x128xf32>,
    %cst_21 = arith.constant 0.000000e+00 : f32
    %87 = vector.broadcast %cst_21 : f32 to vector<1x8x128xf32>
    %c3 = arith.constant 3 : index
    %c0_22 = arith.constant 0 : index
    %c0_23 = arith.constant 0 : index
    %88 = vector.load %arg2[%c3, %c0_22, %c0_23] : memref<4x8x128xf32, #tpu.memory_space<vmem>>, vector<1x8x128xf32>
    tpu.vector_store %arg2[%c3, %c0_22, %c0_23], %87 {strides = array<i32>} : memref<4x8x128xf32, #tpu.memory_space<vmem>>, vector<1x8x128xf32>,
    return
  }
  func.func @transform_0(%arg0: i32) -> (i32, i32, i32) {
    %c0_i32 = arith.constant 0 : i32
    %c0_i32_0 = arith.constant 0 : i32
    %c0_i32_1 = arith.constant 0 : i32
    return %c0_i32, %c0_i32_0, %arg0 : i32, i32, i32
  }
  func.func @transform_1(%arg0: i32) -> (i32, i32, i32) {
    %c0_i32 = arith.constant 0 : i32
    %c0_i32_0 = arith.constant 0 : i32
    %c0_i32_1 = arith.constant 0 : i32
    return %c0_i32, %c0_i32_0, %arg0 : i32, i32, i32
  }
}

</mosaic_0001>

<llo_original>
// kernel: tpu_custom_call.1
$region0: #{tpu_custom_call.1}
  #allocation0 [shape = 'u32[]', space=smem, size = 0x4, offset = 0x4, fixed_abs, tag = 'smem constant byte address 0x4 - core index']
  #allocation1 [shape = 'u32[144,128]{1,0:T(1,128)}', space=vmem, size = 0x12000, scoped, tag = 'internal scratch']
  %s0 = inlined_call_operand.hbm [shape: f32[4,8,128], index: 0, kind: input, shape index: {}]
  %s1 = inlined_call_operand.hbm [shape: f32[4,8,128], index: 1, kind: output, shape index: {}]
  %s2 = sld [smem:[#allocation0]]
  $region18: #{tpu_custom_call.1} parent=0
    _
  %s4 = ssub.s32 1, %s2
  %s5 = scalar_select 0, %s4, %s2
  $region1: #{tpu_custom_call.1} parent=0
    #allocation2 [shape = 'u8[16384]{0}', space=vmem, size = 0x4000, scoped, tag = 'input window, operand 0, single buffered']
    #allocation3 [shape = 's32[1]{0}', space=sflag, size = 0x4, scoped, tag = 'scoped memory for tpu_custom_call.1']
    #allocation4 [shape = 's32[1]{0}', space=sflag, size = 0x4, scoped, tag = 'scoped memory for tpu_custom_call.1']
    #allocation5 [shape = 'u8[16384]{0}', space=vmem, size = 0x4000, scoped, tag = 'output window, operand 0, single buffered']
    %6 = vsyncpa [#allocation3], 0
    %7 = vsyncpa [#allocation4], 0
    // Predicated region
    $region2: #{tpu_custom_call.1} parent=1 // pred_check
      _
    $region3: #{tpu_custom_call.1} parent=1 // pred_check_branch
      %9 = sbr.rel (0) target = $region5
    $region4: #{tpu_custom_call.1} parent=1 // pred_region
      %s11 = ssub.s32 512, 512
      %12 = vsyncadd [#allocation3], %s11
      %s13 = sshll.u32 [#allocation2], 4
      %s14 = int_to_ptr.vmem [resolvable:$true] %s13
      %19 = dma.hbm_to_vmem [thread:$0]  %s0, 512, %s14, [#allocation3], 128, 128, 8
    $region5: #{tpu_custom_call.1} parent=1 // pred_fallthru
      _
    // Predicated region
    $region6: #{tpu_custom_call.1} parent=1 // pred_check
      _
    $region7: #{tpu_custom_call.1} parent=1 // pred_check_branch
      %21 = sbr.rel (0) target = $region9
    $region8: #{tpu_custom_call.1} parent=1 // pred_region
      %22 = dma.done [#allocation3], 512
    $region9: #{tpu_custom_call.1} parent=1 // pred_fallthru
      _
    %v23 = vld [vmem:[#allocation2] sm:$0xff]
    %v24 = vld [vmem:[#allocation2 + $0x8] sm:$0xff]
    %v25 = vld [vmem:[#allocation2 + $0x10] sm:$0xff]
    %v26 = vrot.slane %v23, 4
    %v27 = vmax.f32 %v23, %v26
    %v28 = vrot.slane %v27, 2
    %v29 = vmax.f32 %v27, %v28
    %v30 = vrot.slane %v29, 1
    %v31 = vmax.f32 %v29, %v30
    %v32 = vrot.slane %v24, 4
    %v33 = vmax.f32 %v24, %v32
    %v34 = vrot.slane %v33, 2
    %v35 = vmax.f32 %v33, %v34
    %v36 = vrot.slane %v35, 1
    %v37 = vmax.f32 %v35, %v36
    %v38 = vrot.slane %v25, 4
    %v39 = vmax.f32 %v25, %v38
    %v40 = vrot.slane %v39, 2
    %v41 = vmax.f32 %v39, %v40
    %v42 = vrot.slane %v41, 1
    %v43 = vmax.f32 %v41, %v42
    %v44 = vsub.f32 %v23, %v31
    %v45 = vsub.f32 %v24, %v37
    %v46 = vsub.f32 %v25, %v43
    %v47 = vmul.f32 %v44, 1.442695
    %v48 = vpow.pop %v47
    %v49 = vmul.f32 %v45, 1.442695
    %v50 = vpow.pop %v49
    %v51 = vmul.f32 %v46, 1.442695
    %v52 = vpow.pop %v51
    %v53 = vrot.slane %v48, 4
    %v54 = vadd.f32 %v48, %v53
    %v55 = vrot.slane %v54, 2
    %v56 = vadd.f32 %v54, %v55
    %v57 = vrot.slane %v56, 1
    %v58 = vadd.f32 %v56, %v57
    %v59 = vrot.slane %v50, 4
    %v60 = vadd.f32 %v50, %v59
    %v61 = vrot.slane %v60, 2
    %v62 = vadd.f32 %v60, %v61
    %v63 = vrot.slane %v62, 1
    %v64 = vadd.f32 %v62, %v63
    %v65 = vrot.slane %v52, 4
    %v66 = vadd.f32 %v52, %v65
    %v67 = vrot.slane %v66, 2
    %v68 = vadd.f32 %v66, %v67
    %v69 = vrot.slane %v68, 1
    %v70 = vadd.f32 %v68, %v69
    %v71 = vrcp.pop %v58
    %v72 = vrcp.pop %v64
    %v73 = vrcp.pop %v70
    %v74 = vmul.f32 %v58, %v71
    %v75 = vmul.f32 %v64, %v72
    %v76 = vmul.f32 %v70, %v73
    %v77 = vsub.f32 2.0, %v74
    %v78 = vsub.f32 2.0, %v75
    %v79 = vsub.f32 2.0, %v76
    %v80 = vmul.f32 %v71, %v77
    %v81 = vmul.f32 %v72, %v78
    %v82 = vmul.f32 %v73, %v79
    %v83 = vlaneseq
    %v84 = vshrl.u32 %v83, 7
    %v88 = vand.u32 %v48, 4294967288
    %v89 = vand.u32 %v50, 4294967288
    %v90 = vand.u32 %v52, 4294967288
    %v91 = vsub.s32 7, %v84
    %v92 = vor.u32 %v88, %v91
    %v93 = vor.u32 %v89, %v91
    %v94 = vor.u32 %v90, %v91
    %v95 = vrot.slane %v92, 4
    %vm96 = vcmp.gt.s32.totalorder %v92, %v95
    %v97 = vsel %vm96, %v92, %v95
    %v98 = vrot.slane %v97, 2
    %vm99 = vcmp.gt.s32.totalorder %v97, %v98
    %v100 = vsel %vm99, %v97, %v98
    %v101 = vrot.slane %v100, 1
    %vm102 = vcmp.gt.s32.totalorder %v100, %v101
    %v103 = vsel %vm102, %v100, %v101
    %v104 = vrot.slane %v93, 4
    %vm105 = vcmp.gt.s32.totalorder %v93, %v104
    %v106 = vsel %vm105, %v93, %v104
    %v107 = vrot.slane %v106, 2
    %vm108 = vcmp.gt.s32.totalorder %v106, %v107
    %v109 = vsel %vm108, %v106, %v107
    %v110 = vrot.slane %v109, 1
    %vm111 = vcmp.gt.s32.totalorder %v109, %v110
    %v112 = vsel %vm111, %v109, %v110
    %v113 = vrot.slane %v94, 4
    %vm114 = vcmp.gt.s32.totalorder %v94, %v113
    %v115 = vsel %vm114, %v94, %v113
    %v116 = vrot.slane %v115, 2
    %vm117 = vcmp.gt.s32.totalorder %v115, %v116
    %v118 = vsel %vm117, %v115, %v116
    %v119 = vrot.slane %v118, 1
    %vm120 = vcmp.gt.s32.totalorder %v118, %v119
    %v121 = vsel %vm120, %v118, %v119
    %vm122 = vcmp.eq.s32.totalorder %v92, %v103
    %vm123 = vcmp.eq.s32.totalorder %v93, %v112
    %vm124 = vcmp.eq.s32.totalorder %v94, %v121
    %v125 = vand.u32 %v103, 4294967288
    %v126 = vand.u32 %v112, 4294967288
    %v127 = vand.u32 %v121, 4294967288
    %v131 = vmul.f32 %v125, %v80
    %v132 = vmul.f32 %v126, %v81
    %v133 = vmul.f32 %v127, %v82
    %v134 = vadd.f32 %v131, %v132
    %v135 = vadd.f32 %v134, %v133
    %v136 = vrcp.pop %v135
    %v137 = vmul.f32 %v135, %v136
    %v138 = vsub.f32 2.0, %v137
    %v139 = vmul.f32 %v136, %v138
    %v140 = vmul.f32 %v131, %v139
    %v141 = vmul.f32 %v132, %v139
    %v142 = vmul.f32 %v133, %v139
    %v143 = vsel %vm122, %v140, 0.0
    %v144 = vsel %vm123, %v141, 0.0
    %v145 = vsel %vm124, %v142, 0.0
    %v146 = vsel %vm122, 4294967295, %v92
    %v147 = vsel %vm123, 4294967295, %v93
    %v148 = vsel %vm124, 4294967295, %v94
    %v149 = vrot.slane %v146, 4
    %vm150 = vcmp.gt.s32.totalorder %v146, %v149
    %v151 = vsel %vm150, %v146, %v149
    %v152 = vrot.slane %v151, 2
    %vm153 = vcmp.gt.s32.totalorder %v151, %v152
    %v154 = vsel %vm153, %v151, %v152
    %v155 = vrot.slane %v154, 1
    %vm156 = vcmp.gt.s32.totalorder %v154, %v155
    %v157 = vsel %vm156, %v154, %v155
    %v158 = vrot.slane %v147, 4
    %vm159 = vcmp.gt.s32.totalorder %v147, %v158
    %v160 = vsel %vm159, %v147, %v158
    %v161 = vrot.slane %v160, 2
    %vm162 = vcmp.gt.s32.totalorder %v160, %v161
    %v163 = vsel %vm162, %v160, %v161
    %v164 = vrot.slane %v163, 1
    %vm165 = vcmp.gt.s32.totalorder %v163, %v164
    %v166 = vsel %vm165, %v163, %v164
    %v167 = vrot.slane %v148, 4
    %vm168 = vcmp.gt.s32.totalorder %v148, %v167
    %v169 = vsel %vm168, %v148, %v167
    %v170 = vrot.slane %v169, 2
    %vm171 = vcmp.gt.s32.totalorder %v169, %v170
    %v172 = vsel %vm171, %v169, %v170
    %v173 = vrot.slane %v172, 1
    %vm174 = vcmp.gt.s32.totalorder %v172, %v173
    %v175 = vsel %vm174, %v172, %v173
    %vm176 = vcmp.eq.s32.totalorder %v146, %v157
    %vm177 = vcmp.eq.s32.totalorder %v147, %v166
    %vm178 = vcmp.eq.s32.totalorder %v148, %v175
    %v179 = vand.u32 %v157, 4294967288
    %v180 = vand.u32 %v166, 4294967288
    %v181 = vand.u32 %v175, 4294967288
    %v185 = vmul.f32 %v179, %v80
    %v186 = vmul.f32 %v180, %v81
    %v187 = vmul.f32 %v181, %v82
    %v188 = vadd.f32 %v185, %v186
    %v189 = vadd.f32 %v188, %v187
    %v190 = vrcp.pop %v189
    %v191 = vmul.f32 %v189, %v190
    %v192 = vsub.f32 2.0, %v191
    %v193 = vmul.f32 %v190, %v192
    %v194 = vmul.f32 %v185, %v193
    %v195 = vmul.f32 %v186, %v193
    %v196 = vmul.f32 %v187, %v193
    %v197 = vsel %vm176, %v194, %v143
    %v198 = vsel %vm177, %v195, %v144
    %v199 = vsel %vm178, %v196, %v145
    %v200 = vsel %vm176, 4294967295, %v146
    %v201 = vsel %vm177, 4294967295, %v147
    %v202 = vsel %vm178, 4294967295, %v148
    %v203 = vrot.slane %v200, 4
    %vm204 = vcmp.gt.s32.totalorder %v200, %v203
    %v205 = vsel %vm204, %v200, %v203
    %v206 = vrot.slane %v205, 2
    %vm207 = vcmp.gt.s32.totalorder %v205, %v206
    %v208 = vsel %vm207, %v205, %v206
    %v209 = vrot.slane %v208, 1
    %vm210 = vcmp.gt.s32.totalorder %v208, %v209
    %v211 = vsel %vm210, %v208, %v209
    %v212 = vrot.slane %v201, 4
    %vm213 = vcmp.gt.s32.totalorder %v201, %v212
    %v214 = vsel %vm213, %v201, %v212
    %v215 = vrot.slane %v214, 2
    %vm216 = vcmp.gt.s32.totalorder %v214, %v215
    %v217 = vsel %vm216, %v214, %v215
    %v218 = vrot.slane %v217, 1
    %vm219 = vcmp.gt.s32.totalorder %v217, %v218
    %v220 = vsel %vm219, %v217, %v218
    %v221 = vrot.slane %v202, 4
    %vm222 = vcmp.gt.s32.totalorder %v202, %v221
    %v223 = vsel %vm222, %v202, %v221
    %v224 = vrot.slane %v223, 2
    %vm225 = vcmp.gt.s32.totalorder %v223, %v224
    %v226 = vsel %vm225, %v223, %v224
    %v227 = vrot.slane %v226, 1
    %vm228 = vcmp.gt.s32.totalorder %v226, %v227
    %v229 = vsel %vm228, %v226, %v227
    %vm230 = vcmp.eq.s32.totalorder %v200, %v211
    %vm231 = vcmp.eq.s32.totalorder %v201, %v220
    %vm232 = vcmp.eq.s32.totalorder %v202, %v229
    %v233 = vand.u32 %v211, 4294967288
    %v234 = vand.u32 %v220, 4294967288
    %v235 = vand.u32 %v229, 4294967288
    %v239 = vmul.f32 %v233, %v80
    %v240 = vmul.f32 %v234, %v81
    %v241 = vmul.f32 %v235, %v82
    %v242 = vadd.f32 %v239, %v240
    %v243 = vadd.f32 %v242, %v241
    %v244 = vrcp.pop %v243
    %v245 = vmul.f32 %v243, %v244
    %v246 = vsub.f32 2.0, %v245
    %v247 = vmul.f32 %v244, %v246
    %v248 = vmul.f32 %v239, %v247
    %v249 = vmul.f32 %v240, %v247
    %v250 = vmul.f32 %v241, %v247
    %v251 = vsel %vm230, %v248, %v197
    %v252 = vsel %vm231, %v249, %v198
    %v253 = vsel %vm232, %v250, %v199
    %254 = vst [vmem:[#allocation5] sm:$0xff] %v251
    %255 = vst [vmem:[#allocation5 + $0x8] sm:$0xff] %v252
    %256 = vst [vmem:[#allocation5 + $0x10] sm:$0xff] %v253
    %s257 = scalar_lea.vmem [#allocation5], 24
    %258 = vst [vmem:[%s257] sm:$0xff] 0.0
    // Predicated region
    $region10: #{tpu_custom_call.1} parent=1 // pred_check
      _
    $region11: #{tpu_custom_call.1} parent=1 // pred_check_branch
      %260 = sbr.rel (0) target = $region13
    $region12: #{tpu_custom_call.1} parent=1 // pred_region
      %s262 = ssub.s32 512, 512
      %263 = vsyncadd [#allocation4], %s262
      %s264 = sshll.u32 [#allocation5], 4
      %s265 = int_to_ptr.vmem [resolvable:$true] %s264
      %270 = dma.vmem_to_hbm [thread:$0]  %s265, 512, %s1, [#allocation4], 128, 128, 8
    $region13: #{tpu_custom_call.1} parent=1 // pred_fallthru
      _
    // Predicated region
    $region14: #{tpu_custom_call.1} parent=1 // pred_check
      _
    $region15: #{tpu_custom_call.1} parent=1 // pred_check_branch
      %272 = sbr.rel (0) target = $region17
    $region16: #{tpu_custom_call.1} parent=1 // pred_region
      %273 = dma.done [#allocation4], 512
    $region17: #{tpu_custom_call.1} parent=1 // pred_fallthru
      _
    %274 = vsyncpa [#allocation3], 1
    %275 = vsyncpa [#allocation4], 1

</llo_original>
